<compile_context>
chip_gen: v6e
topology: v6e:2x2x1
jax: 0.10.0
libtpu: 0.0.40
codegen_flags: <defaults>
</compile_context>

<pallas_src>
import functools

import jax
import jax.numpy as jnp
from jax import lax
from jax.experimental import pallas as pl
from jax.experimental.pallas import tpu as pltpu


_VPU_HEAD_MAX_WIDTH = 32  # use the VPU/XLU output head when theta_dim <= this


def _round_up(n: int, m: int) -> int:
    return ((n + m - 1) // m) * m


def _generator_kernel(z_ref, x_ref, w1z_ref, w1x_ref, b1_ref, w2t_ref, b2_ref,
                      o_ref):
    # ---- Layer 1: cat([z, x]) @ W1 + b1 -> ReLU. bf16 MXU, f32 accumulate. ----
    z = z_ref[...].astype(jnp.bfloat16)
    x = x_ref[...].astype(jnp.bfloat16)
    h = jnp.dot(z, w1z_ref[...], preferred_element_type=jnp.float32)
    h = h + jnp.dot(x, w1x_ref[...], preferred_element_type=jnp.float32)
    h = jnp.maximum(h + b1_ref[...], 0.0)          # (block_b, 128) f32

    # ---- Layer 2: h @ W2 + b2, output width = theta_dim (tiny). ----
    theta_dim = w2t_ref.shape[0]                   # w2t is (theta_dim, 128)
    if theta_dim <= _VPU_HEAD_MAX_WIDTH:
        # Tiny-N head: VPU multiply + XLU lane reduction per output column.
        # Avoids burning an almost entirely padded MXU pass per tile.
        for j in range(theta_dim):                 # static, small trip count
            w_row = w2t_ref[j:j + 1, :]                            # (1, 128) f32
            col = jnp.sum(h * w_row, axis=-1, keepdims=True)       # (block_b, 1)
            col = col + b2_ref[:, j:j + 1]                         # (1, 1) bcast
            o_ref[:, j:j + 1] = col.astype(o_ref.dtype)
    else:
        # Wide output: keep it on the MXU (bf16 inputs, f32 accumulation).
        out = lax.dot_general(
            h.astype(jnp.bfloat16), w2t_ref[...].astype(jnp.bfloat16),
            dimension_numbers=(((1,), (1,)), ((), ())),
            preferred_element_type=jnp.float32)
        o_ref[...] = (out + b2_ref[...]).astype(o_ref.dtype)


@functools.partial(jax.jit, static_argnames=("block_b",))
def generator_forward(z, x, w1, b1, w2, b2, *, block_b=None):
    """Generator forward pass.

    Args:
      z:  (B, z_dim) f32 latent.
      x:  (B, x_dim) f32 conditioning input.
      w1: (z_dim + x_dim, 128) f32, layer-1 weight stored (in, out).
      b1: (1, 128) f32.
      w2: (128, theta_dim) f32, layer-2 weight stored (in, out).
      b2: (1, theta_dim) f32.
    Returns:
      (B, theta_dim): Linear(ReLU(Linear(cat([z, x], dim=1)))).
    """
    B, z_dim = z.shape
    Bx, x_dim = x.shape
    assert B == Bx
    H = w1.shape[1]
    theta_dim = w2.shape[1]
    assert w1.shape[0] == z_dim + x_dim

    # Batch tile: big enough to amortize per-step overhead / keep the MXU fed,
    # small enough that large B still yields a multi-step pipelined grid and a
    # tiny VMEM footprint on every chip generation.
    if block_b is None:
        block_b = min(_round_up(B, 8), 2048)
    B_pad = _round_up(B, block_b)
    if B_pad != B:
        pad = B_pad - B
        z = jnp.pad(z, ((0, pad), (0, 0)))
        x = jnp.pad(x, ((0, pad), (0, 0)))

    # Fuse torch.cat into the matmul by splitting W1 per input; pre-cast the
    # MXU weights to bf16 once (bf16-native MXU, half the weight VMEM).
    w1z = w1[:z_dim].astype(jnp.bfloat16)
    w1x = w1[z_dim:].astype(jnp.bfloat16)
    w2t = jnp.transpose(w2)                      # (theta_dim, 128), f32 for VPU head
    b1 = b1.astype(jnp.float32)
    b2 = b2.astype(jnp.float32)

    grid = (B_pad // block_b,)
    full = lambda shape: pl.BlockSpec(shape, lambda i: (0, 0))

    out = pl.pallas_call(
        _generator_kernel,
        out_shape=jax.ShapeDtypeStruct((B_pad, theta_dim), z.dtype),
        grid_spec=pltpu.PrefetchScalarGridSpec(
            num_scalar_prefetch=0,
            grid=grid,
            in_specs=[
                pl.BlockSpec((block_b, z_dim), lambda i: (i, 0)),   # z tile
                pl.BlockSpec((block_b, x_dim), lambda i: (i, 0)),   # x tile
                full((z_dim, H)),                                   # W1[:z_dim] (bf16)
                full((x_dim, H)),                                   # W1[z_dim:] (bf16)
                full((1, H)),                                       # b1
                full((theta_dim, H)),                               # W2^T
                full((1, theta_dim)),                               # b2
            ],
            out_specs=pl.BlockSpec((block_b, theta_dim), lambda i: (i, 0)),
        ),
        compiler_params=pltpu.CompilerParams(
            dimension_semantics=("parallel",),
        ),
    )(z, x, w1z, w1x, b1, w2t, b2)
    return out[:B]


def init_params(key, z_dim, x_dim, theta_dim, hidden=128):
    """nn.Linear-style init: uniform(-1/sqrt(fan_in), +1/sqrt(fan_in)).

    Weights stored as (in_features, out_features) == PyTorch weight.T.
    """
    dims = [(z_dim + x_dim, hidden), (hidden, theta_dim)]
    params = []
    for fan_in, fan_out in dims:
        key, kw, kb = jax.random.split(key, 3)
        bound = float(fan_in) ** -0.5
        w = jax.random.uniform(kw, (fan_in, fan_out), jnp.float32, -bound, bound)
        b = jax.random.uniform(kb, (1, fan_out), jnp.float32, -bound, bound)
        params += [w, b]
    return params


def _reference_forward_f32(z, x, w1, b1, w2, b2):
    h = jnp.maximum(jnp.concatenate([z, x], axis=1) @ w1 + b1, 0.0)
    return h @ w2 + b2


def _reference_forward_bf16(z, x, w1, b1, w2, b2):
    # Mirrors the kernel's precision: bf16 MXU inputs for layer 1 with f32
    # accumulation; layer 2 in true f32 (matches the VPU head).
    xz = jnp.concatenate([z, x], axis=1).astype(jnp.bfloat16)
    h = jnp.dot(xz, w1.astype(jnp.bfloat16), preferred_element_type=jnp.float32)
    h = jnp.maximum(h + b1, 0.0)
    return jnp.dot(h, w2, precision=lax.Precision.HIGHEST,
                   preferred_element_type=jnp.float32) + b2


if __name__ == "__main__":
    key = jax.random.PRNGKey(0)
    B, z_dim, x_dim, theta_dim = 8, 4, 2, 2

    kz, kx, kp = jax.random.split(key, 3)
    z = jax.random.normal(kz, (B, z_dim), jnp.float32)
    x = jax.random.normal(kx, (B, x_dim), jnp.float32)
    w1, b1, w2, b2 = init_params(kp, z_dim, x_dim, theta_dim)

    out = jax.block_until_ready(generator_forward(z, x, w1, b1, w2, b2))
    assert out.shape == (B, theta_dim), out.shape

    ref16 = _reference_forward_bf16(z, x, w1, b1, w2, b2)
    ref32 = _reference_forward_f32(z, x, w1, b1, w2, b2)
    assert jnp.allclose(out, ref16, atol=1e-3, rtol=1e-3), "mismatch vs bf16 reference"
    assert jnp.allclose(out, ref32, atol=5e-2, rtol=5e-2), "mismatch vs f32 reference"

    # Larger, non-divisible batch: exercises padding and a multi-step grid
    # (pipelined input DMA, megacore-shardable 'parallel' batch axis).
    B2 = 4100
    kz2, kx2 = jax.random.split(jax.random.PRNGKey(1))
    z2 = jax.random.normal(kz2, (B2, z_dim), jnp.float32)
    x2 = jax.random.normal(kx2, (B2, x_dim), jnp.float32)
    out2 = jax.block_until_ready(generator_forward(z2, x2, w1, b1, w2, b2))
    assert out2.shape == (B2, theta_dim), out2.shape
    ref2 = _reference_forward_bf16(z2, x2, w1, b1, w2, b2)
    assert jnp.allclose(out2, ref2, atol=1e-3, rtol=1e-3), "mismatch (tiled batch)"

    print("KERNEL_OK")
</pallas_src>

<mosaic_0001>
module attributes {stable_mosaic.version = 11 : i64} {
  func.func @_generator_kernel(%arg0: i32, %arg1: memref<8x4xf32, #tpu.memory_space<vmem>>, %arg2: memref<8x2xf32, #tpu.memory_space<vmem>>, %arg3: memref<4x128xbf16, #tpu.memory_space<vmem>>, %arg4: memref<2x128xbf16, #tpu.memory_space<vmem>>, %arg5: memref<1x128xf32, #tpu.memory_space<vmem>>, %arg6: memref<2x128xf32, #tpu.memory_space<vmem>>, %arg7: memref<1x2xf32, #tpu.memory_space<vmem>>, %arg8: memref<8x2xf32, #tpu.memory_space<vmem>>) attributes {dimension_semantics = [#tpu.dimension_semantics<parallel>], iteration_bounds = array<i64: 1>, scalar_prefetch = 0 : i64, scratch_operands = 0 : i64, tpu.core_type = #tpu.core_type<tc>, window_params = [{transform_indices = @transform_0, window_bounds = array<i64: 8, 4>}, {transform_indices = @transform_1, window_bounds = array<i64: 8, 2>}, {pipeline_mode = #tpu.pipeline_mode<synchronous>, transform_indices = @transform_2, window_bounds = array<i64: 4, 128>}, {pipeline_mode = #tpu.pipeline_mode<synchronous>, transform_indices = @transform_3, window_bounds = array<i64: 2, 128>}, {pipeline_mode = #tpu.pipeline_mode<synchronous>, transform_indices = @transform_4, window_bounds = array<i64: 1, 128>}, {pipeline_mode = #tpu.pipeline_mode<synchronous>, transform_indices = @transform_5, window_bounds = array<i64: 2, 128>}, {pipeline_mode = #tpu.pipeline_mode<synchronous>, transform_indices = @transform_6, window_bounds = array<i64: 1, 2>}, {transform_indices = @transform_7, window_bounds = array<i64: 8, 2>}]} {
    %c0 = arith.constant 0 : index
    %c0_0 = arith.constant 0 : index
    %0 = vector.load %arg1[%c0, %c0_0] : memref<8x4xf32, #tpu.memory_space<vmem>>, vector<8x4xf32>
    %1 = arith.truncf %0 : vector<8x4xf32> to vector<8x4xbf16>
    %c0_1 = arith.constant 0 : index
    %c0_2 = arith.constant 0 : index
    %2 = vector.load %arg2[%c0_1, %c0_2] : memref<8x2xf32, #tpu.memory_space<vmem>>, vector<8x2xf32>
    %3 = arith.truncf %2 : vector<8x2xf32> to vector<8x2xbf16>
    %c0_3 = arith.constant 0 : index
    %c0_4 = arith.constant 0 : index
    %4 = vector.load %arg3[%c0_3, %c0_4] : memref<4x128xbf16, #tpu.memory_space<vmem>>, vector<4x128xbf16>
    %cst = arith.constant dense<0.000000e+00> : vector<8x128xf32>
    %5 = tpu.matmul %1, %4, %cst {dimension_numbers = #tpu.dot_dimension_numbers<[1], [0], [0], [1], [0, 0, 1, 1], [], []>} : vector<8x4xbf16>, vector<4x128xbf16>, vector<8x128xf32> -> vector<8x128xf32>
    %c0_5 = arith.constant 0 : index
    %c0_6 = arith.constant 0 : index
    %6 = vector.load %arg4[%c0_5, %c0_6] : memref<2x128xbf16, #tpu.memory_space<vmem>>, vector<2x128xbf16>
    %cst_7 = arith.constant dense<0.000000e+00> : vector<8x128xf32>
    %7 = tpu.matmul %3, %6, %cst_7 {dimension_numbers = #tpu.dot_dimension_numbers<[1], [0], [0], [1], [0, 0, 1, 1], [], []>} : vector<8x2xbf16>, vector<2x128xbf16>, vector<8x128xf32> -> vector<8x128xf32>
    %8 = arith.addf %5, %7 : vector<8x128xf32>
    %c0_8 = arith.constant 0 : index
    %c0_9 = arith.constant 0 : index
    %9 = vector.load %arg5[%c0_8, %c0_9] : memref<1x128xf32, #tpu.memory_space<vmem>>, vector<1x128xf32>
    %10 = vector.broadcast %9 : vector<1x128xf32> to vector<8x128xf32>
    %11 = arith.addf %8, %10 : vector<8x128xf32>
    %cst_10 = arith.constant 0.000000e+00 : f32
    %12 = vector.broadcast %cst_10 : f32 to vector<8x128xf32>
    %13 = arith.maximumf %11, %12 : vector<8x128xf32>
    %c0_11 = arith.constant 0 : index
    %c0_12 = arith.constant 0 : index
    %14 = vector.load %arg6[%c0_11, %c0_12] : memref<2x128xf32, #tpu.memory_space<vmem>>, vector<1x128xf32>
    %15 = vector.broadcast %14 : vector<1x128xf32> to vector<8x128xf32>
    %16 = arith.mulf %13, %15 : vector<8x128xf32>
    %cst_13 = arith.constant dense<0.000000e+00> : vector<8xf32>
    %17 = vector.multi_reduction <add>, %16, %cst_13 [1] : vector<8x128xf32> to vector<8xf32>
    %18 = vector.shape_cast %17 : vector<8xf32> to vector<8x1xf32>
    %c0_14 = arith.constant 0 : index
    %c0_15 = arith.constant 0 : index
    %19 = vector.load %arg7[%c0_14, %c0_15] : memref<1x2xf32, #tpu.memory_space<vmem>>, vector<1x1xf32>
    %20 = vector.broadcast %19 : vector<1x1xf32> to vector<8x1xf32>
    %21 = arith.addf %18, %20 : vector<8x1xf32>
    %c0_16 = arith.constant 0 : index
    %c0_17 = arith.constant 0 : index
    %22 = vector.load %arg8[%c0_16, %c0_17] : memref<8x2xf32, #tpu.memory_space<vmem>>, vector<8x1xf32>
    tpu.vector_store %arg8[%c0_16, %c0_17], %21 {strides = array<i32>} : memref<8x2xf32, #tpu.memory_space<vmem>>, vector<8x1xf32>,
    %c1 = arith.constant 1 : index
    %c0_18 = arith.constant 0 : index
    %23 = vector.load %arg6[%c1, %c0_18] : memref<2x128xf32, #tpu.memory_space<vmem>>, vector<1x128xf32>
    %24 = vector.broadcast %23 : vector<1x128xf32> to vector<8x128xf32>
    %25 = arith.mulf %13, %24 : vector<8x128xf32>
    %cst_19 = arith.constant dense<0.000000e+00> : vector<8xf32>
    %26 = vector.multi_reduction <add>, %25, %cst_19 [1] : vector<8x128xf32> to vector<8xf32>
    %27 = vector.shape_cast %26 : vector<8xf32> to vector<8x1xf32>
    %c0_20 = arith.constant 0 : index
    %c1_21 = arith.constant 1 : index
    %28 = vector.load %arg7[%c0_20, %c1_21] : memref<1x2xf32, #tpu.memory_space<vmem>>, vector<1x1xf32>
    %29 = vector.broadcast %28 : vector<1x1xf32> to vector<8x1xf32>
    %30 = arith.addf %27, %29 : vector<8x1xf32>
    %c0_22 = arith.constant 0 : index
    %c1_23 = arith.constant 1 : index
    %31 = vector.load %arg8[%c0_22, %c1_23] : memref<8x2xf32, #tpu.memory_space<vmem>>, vector<8x1xf32>
    tpu.vector_store %arg8[%c0_22, %c1_23], %30 {strides = array<i32>} : memref<8x2xf32, #tpu.memory_space<vmem>>, vector<8x1xf32>,
    return
  }
  func.func @transform_0(%arg0: i32) -> (i32, i32) {
    %c0_i32 = arith.constant 0 : i32
    %c0_i32_0 = arith.constant 0 : i32
    return %arg0, %c0_i32 : i32, i32
  }
  func.func @transform_1(%arg0: i32) -> (i32, i32) {
    %c0_i32 = arith.constant 0 : i32
    %c0_i32_0 = arith.constant 0 : i32
    return %arg0, %c0_i32 : i32, i32
  }
  func.func @transform_2(%arg0: i32) -> (i32, i32) {
    %c0_i32 = arith.constant 0 : i32
    %c0_i32_0 = arith.constant 0 : i32
    %c0_i32_1 = arith.constant 0 : i32
    return %c0_i32, %c0_i32_0 : i32, i32
  }
  func.func @transform_3(%arg0: i32) -> (i32, i32) {
    %c0_i32 = arith.constant 0 : i32
    %c0_i32_0 = arith.constant 0 : i32
    %c0_i32_1 = arith.constant 0 : i32
    return %c0_i32, %c0_i32_0 : i32, i32
  }
  func.func @transform_4(%arg0: i32) -> (i32, i32) {
    %c0_i32 = arith.constant 0 : i32
    %c0_i32_0 = arith.constant 0 : i32
    %c0_i32_1 = arith.constant 0 : i32
    return %c0_i32, %c0_i32_0 : i32, i32
  }
  func.func @transform_5(%arg0: i32) -> (i32, i32) {
    %c0_i32 = arith.constant 0 : i32
    %c0_i32_0 = arith.constant 0 : i32
    %c0_i32_1 = arith.constant 0 : i32
    return %c0_i32, %c0_i32_0 : i32, i32
  }
  func.func @transform_6(%arg0: i32) -> (i32, i32) {
    %c0_i32 = arith.constant 0 : i32
    %c0_i32_0 = arith.constant 0 : i32
    %c0_i32_1 = arith.constant 0 : i32
    return %c0_i32, %c0_i32_0 : i32, i32
  }
  func.func @transform_7(%arg0: i32) -> (i32, i32) {
    %c0_i32 = arith.constant 0 : i32
    %c0_i32_0 = arith.constant 0 : i32
    return %arg0, %c0_i32 : i32, i32
  }
}

</mosaic_0001>

<llo_original>
// kernel: generator_forward.1
$region0: #{generator_forward.1}
  #allocation0 [shape = 'u32[]', space=smem, size = 0x4, offset = 0x4, fixed_abs, tag = 'smem constant byte address 0x4 - core index']
  #allocation1 [shape = 'u32[144,128]{1,0:T(1,128)}', space=vmem, size = 0x12000, scoped, tag = 'internal scratch']
  %s0 = inlined_call_operand.vmem [shape: f32[8,4], index: 0, kind: input, shape index: {}]
  %s1 = inlined_call_operand.vmem [shape: f32[8,2], index: 1, kind: input, shape index: {}]
  %s2 = inlined_call_operand.vmem [shape: bf16[4,128], index: 2, kind: input, shape index: {}]
  %s3 = inlined_call_operand.vmem [shape: bf16[2,128], index: 3, kind: input, shape index: {}]
  %s4 = inlined_call_operand.vmem [shape: f32[1,128], index: 4, kind: input, shape index: {}]
  %s5 = inlined_call_operand.vmem [shape: f32[2,128], index: 5, kind: input, shape index: {}]
  %s6 = inlined_call_operand.vmem [shape: f32[1,2], index: 6, kind: input, shape index: {}]
  %s7 = inlined_call_operand.vmem [shape: f32[8,2], index: 7, kind: output, shape index: {}]
  %s8 = sld [smem:[#allocation0]]
  $region38: #{generator_forward.1} parent=0
    _
  %s10 = ssub.s32 1, %s8
  %s11 = scalar_select 0, %s10, %s8
  // Predicated region
  $region2: #{generator_forward.1} parent=0 // pred_check
    _
  $region3: #{generator_forward.1} parent=0 // pred_check_branch
    %13 = sbr.rel (0) target = $region5
  $region4: #{generator_forward.1} parent=0 // pred_region
    _
  $region5: #{generator_forward.1} parent=0 // pred_fallthru
    _
  // Predicated region
  $region6: #{generator_forward.1} parent=0 // pred_check
    _
  $region7: #{generator_forward.1} parent=0 // pred_check_branch
    %15 = sbr.rel (0) target = $region9
  $region8: #{generator_forward.1} parent=0 // pred_region
    _
  $region9: #{generator_forward.1} parent=0 // pred_fallthru
    _
  // Predicated region
  $region10: #{generator_forward.1} parent=0 // pred_check
    _
  $region11: #{generator_forward.1} parent=0 // pred_check_branch
    %17 = sbr.rel (0) target = $region13
  $region12: #{generator_forward.1} parent=0 // pred_region
    _
  $region13: #{generator_forward.1} parent=0 // pred_fallthru
    _
  // Predicated region
  $region14: #{generator_forward.1} parent=0 // pred_check
    _
  $region15: #{generator_forward.1} parent=0 // pred_check_branch
    %19 = sbr.rel (0) target = $region17
  $region16: #{generator_forward.1} parent=0 // pred_region
    _
  $region17: #{generator_forward.1} parent=0 // pred_fallthru
    _
  // Predicated region
  $region18: #{generator_forward.1} parent=0 // pred_check
    _
  $region19: #{generator_forward.1} parent=0 // pred_check_branch
    %21 = sbr.rel (0) target = $region21
  $region20: #{generator_forward.1} parent=0 // pred_region
    _
  $region21: #{generator_forward.1} parent=0 // pred_fallthru
    _
  // Predicated region
  $region22: #{generator_forward.1} parent=0 // pred_check
    _
  $region23: #{generator_forward.1} parent=0 // pred_check_branch
    %23 = sbr.rel (0) target = $region25
  $region24: #{generator_forward.1} parent=0 // pred_region
    _
  $region25: #{generator_forward.1} parent=0 // pred_fallthru
    _
  // Predicated region
  $region26: #{generator_forward.1} parent=0 // pred_check
    _
  $region27: #{generator_forward.1} parent=0 // pred_check_branch
    %25 = sbr.rel (0) target = $region29
  $region28: #{generator_forward.1} parent=0 // pred_region
    _
  $region29: #{generator_forward.1} parent=0 // pred_fallthru
    _
  %v27 = vld [vmem:[%s0] sm:$0xff]
  %v28 = vpack.c.bf16 %v27, %v27
  %v29 = vld [vmem:[%s1] sm:$0xff]
  %v30 = vpack.c.bf16 %v29, %v29
  %v31 = vld [vmem:[%s2] sm:$0x3]
  %v32 = vld [vmem:[%s3] sm:$0x1]
  %vm33 = vcmask 15360
  %v35 = vsel %vm33, %v30, 0
  %vm37 = vcmask 1040384
  %v39 = vsel %vm37, %v32, 0
  %41 = vmatprep.subr.bf16.mxu0 0
  %42 = vmatpush1.bf16.msra.mxu0 0
  %43 = vmatprep.subr.bf16.mxu0 0
  %44 = vmatpush1.bf16.msra.mxu0 0
  %45 = vmatprep.subr.bf16.mxu0 0
  %46 = vmatpush1.bf16.msra.mxu0 0
  %47 = vmatprep.subr.bf16.mxu0 0
  %48 = vmatpush1.bf16.msra.mxu0 0
  %49 = vmatprep.subr.bf16.mxu0 0
  %50 = vmatpush1.bf16.msra.mxu0 0
  %51 = vmatprep.subr.bf16.mxu0 0
  %52 = vmatpush1.bf16.msra.mxu0 0
  %53 = vmatprep.subr.bf16.mxu0 0
  %54 = vmatpush1.bf16.msra.mxu0 0
  %55 = vmatprep.subr.bf16.mxu0 0
  %56 = vmatpush1.bf16.msra.mxu0 %v39
  %57 = vmatprep.subr.bf16.mxu0 0
  %58 = vmatpush2.bf16.msra.mxu0 0
  %59 = vmatprep.subr.bf16.mxu0 0
  %60 = vmatpush2.bf16.msra.mxu0 0
  %61 = vmatprep.subr.bf16.mxu0 0
  %62 = vmatpush2.bf16.msra.mxu0 0
  %63 = vmatprep.subr.bf16.mxu0 0
  %64 = vmatpush2.bf16.msra.mxu0 0
  %65 = vmatprep.subr.bf16.mxu0 0
  %66 = vmatpush2.bf16.msra.mxu0 0
  %67 = vmatprep.subr.bf16.mxu0 0
  %68 = vmatpush2.bf16.msra.mxu0 0
  %69 = vmatprep.subr.bf16.mxu0 0
  %70 = vmatpush2.bf16.msra.mxu0 0
  %71 = vmatprep.subr.bf16.mxu0 0
  %72 = vmatpush2.bf16.msra.mxu0 0
  %73 = vmatprep.mubr.bf16.mxu0 0
  %74 = vmatmul.mubr.bf16.gmra.mxu0 %v35
  %v75 = vpop.f32.mrf.mxu0
  %v76 = vadd.f32 0.0, %v75
  %v77 = vpop.f32.mrf.mxu0
  %v78 = vpop.f32.mrf.mxu0
  %v79 = vpop.f32.mrf.mxu0
  %80 = vdwg.mxu0
  %vm81 = vcmask 31744
  %v83 = vsel %vm81, %v28, 0
  %vm85 = vcmask 1041408
  %v87 = vsel %vm85, %v31, 0
  %89 = vmatprep.subr.bf16.mxu0 0
  %90 = vmatpush1.bf16.msra.mxu0 0
  %91 = vmatprep.subr.bf16.mxu0 0
  %92 = vmatpush1.bf16.msra.mxu0 0
  %93 = vmatprep.subr.bf16.mxu0 0
  %94 = vmatpush1.bf16.msra.mxu0 0
  %95 = vmatprep.subr.bf16.mxu0 0
  %96 = vmatpush1.bf16.msra.mxu0 0
  %97 = vmatprep.subr.bf16.mxu0 0
  %98 = vmatpush1.bf16.msra.mxu0 0
  %99 = vmatprep.subr.bf16.mxu0 0
  %100 = vmatpush1.bf16.msra.mxu0 0
  %101 = vmatprep.subr.bf16.mxu0 0
  %102 = vmatpush1.bf16.msra.mxu0 0
  %103 = vmatprep.subr.bf16.mxu0 0
  %104 = vmatpush1.bf16.msra.mxu0 %v87
  %105 = vmatprep.subr.bf16.mxu0 0
  %106 = vmatpush2.bf16.msra.mxu0 0
  %107 = vmatprep.subr.bf16.mxu0 0
  %108 = vmatpush2.bf16.msra.mxu0 0
  %109 = vmatprep.subr.bf16.mxu0 0
  %110 = vmatpush2.bf16.msra.mxu0 0
  %111 = vmatprep.subr.bf16.mxu0 0
  %112 = vmatpush2.bf16.msra.mxu0 0
  %113 = vmatprep.subr.bf16.mxu0 0
  %114 = vmatpush2.bf16.msra.mxu0 0
  %115 = vmatprep.subr.bf16.mxu0 0
  %116 = vmatpush2.bf16.msra.mxu0 0
  %117 = vmatprep.subr.bf16.mxu0 0
  %118 = vmatpush2.bf16.msra.mxu0 0
  %119 = vmatprep.subr.bf16.mxu0 0
  %120 = vmatpush2.bf16.msra.mxu0 0
  %121 = vmatprep.mubr.bf16.mxu0 0
  %122 = vmatmul.mubr.bf16.gmra.mxu0 %v83
  %v123 = vpop.f32.mrf.mxu0
  %v124 = vadd.f32 %v76, %v123
  %v125 = vpop.f32.mrf.mxu0
  %v126 = vpop.f32.mrf.mxu0
  %v127 = vpop.f32.mrf.mxu0
  %128 = vdwg.mxu0
  %v129 = vld [vmem:[%s4] sm:$0x1]
  %v131 = vlaneseq
  %v132 = vshrl.u32 %v131, 7
  %v133 = vsub.s32 0, %v132
  %v134 = vrot.slane %v129, %v133
  %v136 = vadd.f32 %v124, %v134
  %v137 = vmax.f32 %v136, 0.0
  %v138 = vld [vmem:[%s5] sm:$0x1]
  %v139 = vlaneseq
  %v140 = vshrl.u32 %v139, 7
  %v141 = vsub.s32 0, %v140
  %v142 = vrot.slane %v138, %v141
  %v143 = vmul.f32 %v137, %v142
  %144 = vadd.xlane.f32.xlu0 %v143
  %v145 = vpop.xlane.xlu0 %144
  %v146 = vld [vmem:[%s6] sm:$0x1]
  %v148 = vlaneseq
  %v149 = vshrl.u32 %v148, 7
  %v150 = vsub.s32 0, %v149
  %v151 = vrot.slane %v146, %v150
  %v153 = vadd.f32 %v145, %v151
  %vm154 = vcmask 7168
  %155 = vst.msk [vmem:[%s7] sm:$0xff] %vm154, %v153
  %v156 = vld [vmem:[%s5 + $0x1] sm:$0x1]
  %v157 = vlaneseq
  %v158 = vshrl.u32 %v157, 7
  %v159 = vsub.s32 0, %v158
  %v160 = vrot.slane %v156, %v159
  %v161 = vmul.f32 %v137, %v160
  %162 = vadd.xlane.f32.xlu0 %v161
  %v163 = vpop.xlane.xlu0 %162
  %v164 = vld [vmem:[%s6] sm:$0x1]
  %v166 = vlaneseq
  %v167 = vshrl.u32 %v166, 7
  %v168 = vsub.s32 0, %v167
  %v169 = vrot.slane %v164, %v168
  %v171 = vadd.f32 %v163, %v169
  %vm172 = vcmask 15368
  %173 = vst.msk [vmem:[%s7] sm:$0xff] %vm172, %v171
  // Predicated region
  $region30: #{generator_forward.1} parent=0 // pred_check
    _
  $region31: #{generator_forward.1} parent=0 // pred_check_branch
    %175 = sbr.rel (0) target = $region33
  $region32: #{generator_forward.1} parent=0 // pred_region
    _
  $region33: #{generator_forward.1} parent=0 // pred_fallthru
    _
  // Predicated region
  $region34: #{generator_forward.1} parent=0 // pred_check
    _
  $region35: #{generator_forward.1} parent=0 // pred_check_branch
    %177 = sbr.rel (0) target = $region37
  $region36: #{generator_forward.1} parent=0 // pred_region
    _
  $region37: #{generator_forward.1} parent=0 // pred_fallthru
    _

</llo_original>
